<compile_context>
chip_gen: v7x
topology: tpu7x:2x2x1
jax: 0.10.0
libtpu: 0.0.40
codegen_flags: <defaults>
</compile_context>

<pallas_src>
import functools

import jax
import jax.numpy as jnp
from jax import lax
from jax.experimental import pallas as pl
from jax.experimental.pallas import tpu as pltpu

_EPS_SQ = 1e-24  # F.normalize eps (1e-12), applied to the *squared* norm


# ----------------------------------------------------------------------------
# Row L2-normalization (one pass, gridded over row blocks).
# ----------------------------------------------------------------------------
def _rownorm_kernel(w_ref, o_ref):
    w = w_ref[...].astype(jnp.float32)
    sq = jnp.sum(w * w, axis=1, keepdims=True)
    o_ref[...] = (w * lax.rsqrt(jnp.maximum(sq, _EPS_SQ))).astype(o_ref.dtype)


# ----------------------------------------------------------------------------
# Small-N path: single un-gridded kernel, whole weight matrix in one VMEM tile.
# N is padded only to a multiple of 8; padded rows / the diagonal are masked,
# the diagonal contribution (n * relu(margin)^2) is added analytically.
# ----------------------------------------------------------------------------
def _spread_kernel_small(ws_ref, out_ref, *, margin, n):
    w = ws_ref[...].astype(jnp.float32)
    np_ = w.shape[0]
    sq = jnp.sum(w * w, axis=1, keepdims=True)
    wn = w * lax.rsqrt(jnp.maximum(sq, _EPS_SQ))
    # Gram without an explicit transpose: contract dim 1 of both operands.
    g = lax.dot_general(wn, wn, (((1,), (1,)), ((), ())),
                        preferred_element_type=jnp.float32)
    # relu(margin - 0.5*(1 - g)) = relu((margin - 0.5) + 0.5*g)
    hinged = jnp.maximum(jnp.float32(margin - 0.5) + 0.5 * g, 0.0)
    row = lax.broadcasted_iota(jnp.int32, (np_, np_), 0)
    col = lax.broadcasted_iota(jnp.int32, (np_, np_), 1)
    keep = (row < n) & (col < n) & (row != col)
    off = jnp.where(keep, hinged * hinged, 0.0)
    diag_total = jnp.float32(n * max(margin, 0.0) ** 2)
    out_ref[0, 0] = (jnp.sum(off) + diag_total) * jnp.float32(1.0 / (n * n))


# ----------------------------------------------------------------------------
# Large-N path: tiled Gram over upper-triangular block pairs.
# Block indices + per-pair weights come in via scalar prefetch; grid is
# (num_cores ["parallel"], steps_per_core ["arbitrary"]); each core owns its
# own (8, tile) f32 partial-sum output block.
# ----------------------------------------------------------------------------
def _spread_kernel_tiled(bi_ref, bj_ref, wgt_ref, wsi_ref, wsj_ref, out_ref, *,
                         margin, n, tile, steps_per_core):
    t = pl.program_id(1)

    @pl.when(t == 0)
    def _():
        out_ref[...] = jnp.zeros_like(out_ref)

    step = pl.program_id(0) * steps_per_core + t
    bi = bi_ref[step]
    bj = bj_ref[step]
    w = wgt_ref[step].astype(jnp.float32)     # 1.0 diag-block, 2.0 off-diag, 0.0 pad

    # (tile, d) x (tile, d) -> (tile, tile), contracting dim 1 of both (no .T).
    g = lax.dot_general(wsi_ref[...], wsj_ref[...], (((1,), (1,)), ((), ())),
                        preferred_element_type=jnp.float32)
    hinged = jnp.maximum(jnp.float32(margin - 0.5) + 0.5 * g, 0.0)

    # Scalar-relative masks: drop padded rows/cols and (on diagonal blocks)
    # the global diagonal, all in one select.  Diagonal entries are accounted
    # for analytically in the wrapper.
    row = lax.broadcasted_iota(jnp.int32, (tile, tile), 0)
    col = lax.broadcasted_iota(jnp.int32, (tile, tile), 1)
    keep = ((row < (n - bi * tile)) & (col < (n - bj * tile))
            & ((bi != bj) | (row != col)))
    sq = jnp.where(keep, hinged * hinged, 0.0)

    # Reduce (tile, tile) -> (8, tile) with VPU adds only: pairwise tree over
    # (8, tile) slabs that are exactly aligned to the (8, 128) vreg tiling.
    slabs = [sq[a * 8:(a + 1) * 8, :] for a in range(tile // 8)]
    while len(slabs) > 1:
        nxt = [slabs[k] + slabs[k + 1] for k in range(0, len(slabs) - 1, 2)]
        if len(slabs) % 2:
            nxt.append(slabs[-1])
        slabs = nxt

    out_ref[...] += w * slabs[0]


# ----------------------------------------------------------------------------
# Wrapper with small/large dispatch.
# ----------------------------------------------------------------------------
def spread_model_loss(ws: jax.Array, margin: float, *, tile: int = 256,
                      use_bf16_mxu: bool = False, num_cores: int = 2,
                      small_path_vmem_bytes: int = 8 * 1024 * 1024) -> jax.Array:
    """Pallas-backed equivalent of SpreadModel(ws, margin).forward()."""
    n, d = ws.shape
    margin = float(margin)
    diag_total = float(n) * max(margin, 0.0) ** 2   # diagonal contribution

    # ---- small path: whole problem in one un-gridded kernel ----------------
    # Rough live-VMEM estimate: inputs + ~6 (N,N) f32-sized intermediates.
    small_est = 2 * n * d * 4 + 6 * n * n * 4
    if small_est <= small_path_vmem_bytes:
        n8 = -(-n // 8) * 8
        ws_s = ws if n8 == n else jnp.pad(ws, ((0, n8 - n), (0, 0)))
        kernel = functools.partial(_spread_kernel_small, margin=margin, n=n)
        out = pl.pallas_call(
            kernel,
            out_shape=jax.ShapeDtypeStruct((1, 1), jnp.float32),
            in_specs=[pl.BlockSpec(memory_space=pltpu.MemorySpace.VMEM)],
            out_specs=pl.BlockSpec(memory_space=pltpu.MemorySpace.SMEM),
        )(ws_s)
        return out[0, 0]

    # ---- tiled path ---------------------------------------------------------
    assert tile % 128 == 0, "tile must be a multiple of 128"
    num_cores = max(1, int(num_cores))
    nb = -(-n // tile)
    n_pad = nb * tile
    ws_f = ws if n_pad == n else jnp.pad(ws, ((0, n_pad - n), (0, 0)))

    # Normalize rows once (optionally emitting bf16 for the MXU on v6e/v7x).
    norm_dtype = jnp.bfloat16 if use_bf16_mxu else jnp.float32
    ws_n = pl.pallas_call(
        _rownorm_kernel,
        out_shape=jax.ShapeDtypeStruct((n_pad, d), norm_dtype),
        grid=(nb,),
        in_specs=[pl.BlockSpec((tile, d), lambda i: (i, 0))],
        out_specs=pl.BlockSpec((tile, d), lambda i: (i, 0)),
        compiler_params=pltpu.CompilerParams(
            dimension_semantics=("parallel",)),
    )(ws_f)

    # Upper-triangular block pairs, serpentine j-order for DMA reuse.
    pairs, wts = [], []
    for i in range(nb):
        js = list(range(i, nb))
        if i % 2 == 1:
            js.reverse()
        for j in js:
            pairs.append((i, j))
            wts.append(1 if i == j else 2)
    steps_per_core = -(-len(pairs) // num_cores)
    total_steps = steps_per_core * num_cores
    while len(pairs) < total_steps:       # pad: repeat last pair, weight 0
        pairs.append(pairs[-1])
        wts.append(0)

    bi = jnp.asarray([p[0] for p in pairs], dtype=jnp.int32)
    bj = jnp.asarray([p[1] for p in pairs], dtype=jnp.int32)
    wgt = jnp.asarray(wts, dtype=jnp.int32)

    kernel = functools.partial(_spread_kernel_tiled, margin=margin, n=n,
                               tile=tile, steps_per_core=steps_per_core)
    spc = steps_per_core

    partials = pl.pallas_call(
        kernel,
        out_shape=jax.ShapeDtypeStruct((num_cores, 8, tile), jnp.float32),
        grid_spec=pltpu.PrefetchScalarGridSpec(
            num_scalar_prefetch=3,
            grid=(num_cores, spc),
            in_specs=[
                pl.BlockSpec(
                    (tile, d),
                    lambda c, t, bi_r, bj_r, w_r: (bi_r[c * spc + t], 0)),
                pl.BlockSpec(
                    (tile, d),
                    lambda c, t, bi_r, bj_r, w_r: (bj_r[c * spc + t], 0)),
            ],
            out_specs=pl.BlockSpec(
                (None, 8, tile),
                lambda c, t, bi_r, bj_r, w_r: (c, 0, 0)),
        ),
        compiler_params=pltpu.CompilerParams(
            dimension_semantics=("parallel", "arbitrary")),
    )(bi, bj, wgt, ws_n, ws_n)

    total_sum = jnp.sum(partials)         # tiny (num_cores*8*tile) XLA reduce
    return (total_sum + jnp.float32(diag_total)) * jnp.float32(1.0 / (n * n))


# ----------------------------------------------------------------------------
# Pure-JAX reference mirroring the PyTorch forward (for verification).
# ----------------------------------------------------------------------------
def _reference_loss(ws: jax.Array, margin: float) -> jax.Array:
    ws = ws.astype(jnp.float32)
    norm = jnp.sqrt(jnp.sum(ws * ws, axis=1, keepdims=True))
    ws_n = ws / jnp.maximum(norm, 1e-12)
    n = ws.shape[0]
    cos_dis = 0.5 * (1.0 - ws_n @ ws_n.T)
    cos_dis = cos_dis * (1.0 - jnp.eye(n, dtype=jnp.float32))
    diff = margin - cos_dis
    indx = (diff > 0.0).astype(jnp.float32)
    return jnp.mean((diff * indx) ** 2)


if __name__ == "__main__":
    key = jax.random.PRNGKey(0)
    k1, k2 = jax.random.split(key)
    margin = 0.7

    # Small path: 8 classes x 32 features.
    ws_small = jax.random.normal(k1, (8, 32), dtype=jnp.float32)
    loss_small = jax.block_until_ready(spread_model_loss(ws_small, margin))
    ref_small = jax.block_until_ready(_reference_loss(ws_small, margin))
    assert jnp.allclose(loss_small, ref_small, atol=1e-5, rtol=1e-5), (
        loss_small, ref_small)

    ws_mid = jax.random.normal(k2, (300, 64), dtype=jnp.float32)
    ref_mid = jax.block_until_ready(_reference_loss(ws_mid, margin))

    # Raised small-path cutoff: N=300 now runs un-gridded (pads only 300->304).
    loss_mid = jax.block_until_ready(spread_model_loss(ws_mid, margin))
    assert jnp.allclose(loss_mid, ref_mid, atol=2e-5, rtol=1e-3), (
        loss_mid, ref_mid)

    # Force the tiled path: padding 300->384, serpentine pairs, weight-2
    # off-diagonal blocks, per-core partial sums, vreg accumulator.
    loss_t128 = jax.block_until_ready(
        spread_model_loss(ws_mid, margin, tile=128, small_path_vmem_bytes=0))
    assert jnp.allclose(loss_t128, ref_mid, atol=2e-5, rtol=1e-3), (
        loss_t128, ref_mid)

    # tile=256 exercises the weight-0 padded grid step (3 pairs over 2 cores).
    loss_t256 = jax.block_until_ready(
        spread_model_loss(ws_mid, margin, tile=256, small_path_vmem_bytes=0))
    assert jnp.allclose(loss_t256, ref_mid, atol=2e-5, rtol=1e-3), (
        loss_t256, ref_mid)

    # bf16 MXU path (v6e/v7x): weights cast to bf16 once in the wrapper pass.
    loss_bf16 = jax.block_until_ready(
        spread_model_loss(ws_mid, margin, tile=128, small_path_vmem_bytes=0,
                          use_bf16_mxu=True))
    assert jnp.allclose(loss_bf16, ref_mid, atol=1e-3, rtol=5e-2), (
        loss_bf16, ref_mid)

    print("KERNEL_OK")
</pallas_src>

<mosaic_0001>
module attributes {stable_mosaic.version = 11 : i64} {
  func.func @_spread_kernel_small(%arg0: memref<8x32xf32, #tpu.memory_space<vmem>>, %arg1: memref<1x1xf32, #tpu.memory_space<smem>>) attributes {dimension_semantics = [], scalar_prefetch = 0 : i64, scratch_operands = 0 : i64, tpu.core_type = #tpu.core_type<tc>} {
    %c0 = arith.constant 0 : index
    %c0_0 = arith.constant 0 : index
    %0 = vector.load %arg0[%c0, %c0_0] : memref<8x32xf32, #tpu.memory_space<vmem>>, vector<8x32xf32>
    %1 = arith.mulf %0, %0 : vector<8x32xf32>
    %cst = arith.constant dense<0.000000e+00> : vector<8xf32>
    %2 = vector.multi_reduction <add>, %1, %cst [1] : vector<8x32xf32> to vector<8xf32>
    %3 = vector.shape_cast %2 : vector<8xf32> to vector<8x1xf32>
    %cst_1 = arith.constant 1.000000e-24 : f32
    %4 = vector.broadcast %cst_1 : f32 to vector<8x1xf32>
    %5 = arith.maximumf %3, %4 : vector<8x1xf32>
    %6 = math.rsqrt %5 : vector<8x1xf32>
    %7 = vector.broadcast %6 : vector<8x1xf32> to vector<8x32xf32>
    %8 = arith.mulf %0, %7 : vector<8x32xf32>
    %cst_2 = arith.constant dense<0.000000e+00> : vector<8x8xf32>
    %9 = tpu.matmul %8, %8, %cst_2 {dimension_numbers = #tpu.dot_dimension_numbers<[1], [1], [0], [0], [0, 0, 1, 0], [], []>} : vector<8x32xf32>, vector<8x32xf32>, vector<8x8xf32> -> vector<8x8xf32>
    %cst_3 = arith.constant 5.000000e-01 : f32
    %10 = vector.broadcast %cst_3 : f32 to vector<8x8xf32>
    %11 = arith.mulf %10, %9 : vector<8x8xf32>
    %cst_4 = arith.constant 2.000000e-01 : f32
    %12 = vector.broadcast %cst_4 : f32 to vector<8x8xf32>
    %13 = arith.addf %12, %11 : vector<8x8xf32>
    %cst_5 = arith.constant 0.000000e+00 : f32
    %14 = vector.broadcast %cst_5 : f32 to vector<8x8xf32>
    %15 = arith.maximumf %13, %14 : vector<8x8xf32>
    %16 = tpu.iota {dimensions = array<i32: 0>} : vector<8x8xi32>
    %17 = tpu.iota {dimensions = array<i32: 1>} : vector<8x8xi32>
    %c8_i32 = arith.constant 8 : i32
    %18 = vector.broadcast %c8_i32 : i32 to vector<8x8xi32>
    %19 = arith.cmpi slt, %16, %18 : vector<8x8xi32>
    %c8_i32_6 = arith.constant 8 : i32
    %20 = vector.broadcast %c8_i32_6 : i32 to vector<8x8xi32>
    %21 = arith.cmpi slt, %17, %20 : vector<8x8xi32>
    %22 = arith.andi %19, %21 : vector<8x8xi1>
    %23 = arith.cmpi ne, %16, %17 : vector<8x8xi32>
    %24 = arith.andi %22, %23 : vector<8x8xi1>
    %25 = arith.mulf %15, %15 : vector<8x8xf32>
    %cst_7 = arith.constant 0.000000e+00 : f32
    %26 = vector.broadcast %cst_7 : f32 to vector<8x8xf32>
    %27 = arith.select %24, %25, %26 : vector<8x8xi1>, vector<8x8xf32>
    %28 = vector.shape_cast %27 : vector<8x8xf32> to vector<1x8x8xf32>
    %cst_8 = arith.constant dense<0.000000e+00> : vector<1xf32>
    %29 = vector.multi_reduction <add>, %28, %cst_8 [1, 2] : vector<1x8x8xf32> to vector<1xf32>
    %30 = vector.shape_cast %29 : vector<1xf32> to vector<1x1x1xf32>
    %31 = vector.extract %30[0, 0, 0] : f32 from vector<1x1x1xf32>
    %cst_9 = arith.constant 3.920000e+00 : f32
    %32 = arith.addf %31, %cst_9 : f32
    %cst_10 = arith.constant 1.562500e-02 : f32
    %33 = arith.mulf %32, %cst_10 : f32
    %c0_11 = arith.constant 0 : index
    %c0_12 = arith.constant 0 : index
    %34 = memref.load %arg1[%c0_11, %c0_12] : memref<1x1xf32, #tpu.memory_space<smem>>
    memref.store %33, %arg1[%c0_11, %c0_12] : memref<1x1xf32, #tpu.memory_space<smem>>
    return
  }
}

</mosaic_0001>

<llo_original>
// kernel: tpu_custom_call.1
$region0: #{tpu_custom_call.1}
  #allocation0 [shape = 'u32[]', space=smem, size = 0x4, offset = 0x4, fixed_abs, tag = 'smem constant byte address 0x4 - core index']
  #allocation1 [shape = 'u32[144,128]{1,0:T(1,128)}', space=vmem, size = 0x12000, scoped, tag = 'internal scratch']
  %s0 = inlined_call_operand.hbm [shape: f32[8,32], index: 0, kind: input, shape index: {}]
  %s1 = inlined_call_operand.hbm [shape: f32[1,1], index: 1, kind: output, shape index: {}]
  %s2 = sld [smem:[#allocation0]]
  $region18: #{tpu_custom_call.1} parent=0
    _
  %s4 = ssub.s32 1, %s2
  %s5 = scalar_select 0, %s4, %s2
  $region1: #{tpu_custom_call.1} parent=0
    #allocation2 [shape = 'u8[4096]{0}', space=vmem, size = 0x1000, scoped, tag = 'input window, operand 0, single buffered']
    #allocation3 [shape = 's32[1]{0}', space=sflag, size = 0x4, scoped, tag = 'scoped memory for tpu_custom_call.1']
    #allocation4 [shape = 's32[1]{0}', space=sflag, size = 0x4, scoped, tag = 'scoped memory for tpu_custom_call.1']
    #allocation5 [shape = 'u8[512]{0}', space=smem, size = 0x200, scoped, tag = 'output window, operand 0, single buffered']
    %6 = vsyncpa [#allocation3], 0
    %7 = vsyncpa [#allocation4], 0
    // Predicated region
    $region2: #{tpu_custom_call.1} parent=1 // pred_check
      _
    $region3: #{tpu_custom_call.1} parent=1 // pred_check_branch
      %9 = sbr.rel (0) target = $region5
    $region4: #{tpu_custom_call.1} parent=1 // pred_region
      %s11 = ssub.s32 128, 128
      %12 = vsyncadd [#allocation3], %s11
      %s14 = sshll.u32 [#allocation2], 4
      %s15 = int_to_ptr.vmem [resolvable:$true] %s14
      %17 = dma.hbm_to_vmem [thread:$0]  %s0, 128, %s15, [#allocation3]
    $region5: #{tpu_custom_call.1} parent=1 // pred_fallthru
      _
    // Predicated region
    $region6: #{tpu_custom_call.1} parent=1 // pred_check
      _
    $region7: #{tpu_custom_call.1} parent=1 // pred_check_branch
      %19 = sbr.rel (0) target = $region9
    $region8: #{tpu_custom_call.1} parent=1 // pred_region
      %20 = dma.done [#allocation3], 128
    $region9: #{tpu_custom_call.1} parent=1 // pred_fallthru
      _
    %v21 = vld [vmem:[#allocation2] sm:$0xff]
    %v22 = vmul.f32 %v21, %v21
    %vm23 = vcmask 261120
    %v24 = vsel %vm23, %v22, 0.0
    %25 = vadd.xlane.f32.xlu0 %v24
    %v26 = vpop.xlane.xlu0 %25
    %v27 = vmax.f32 %v26, 1e-24
    %v28 = vrsqrt.pop %v27
    %v29 = vmul.f32 %v21, %v28
    %v31 = vsel %vm23, %v29, 0
    %33 = vmatprep.subr.mxu0 0.0
    %34 = vmatpush1.xpose.msra.mxu0 %v31
    %35 = vmatprep.subr.mxu0 0.0
    %36 = vmatpush1.xpose.msra.mxu0 0.0
    %37 = vmatprep.subr.mxu0 0.0
    %38 = vmatpush1.xpose.msra.mxu0 0.0
    %39 = vmatprep.subr.mxu0 0.0
    %40 = vmatpush1.xpose.msra.mxu0 0.0
    %41 = vmatprep.subr.mxu0 0.0
    %42 = vmatpush1.xpose.msra.mxu0 0.0
    %43 = vmatprep.subr.mxu0 0.0
    %44 = vmatpush1.xpose.msra.mxu0 0.0
    %45 = vmatprep.subr.mxu0 0.0
    %46 = vmatpush1.xpose.msra.mxu0 0.0
    %47 = vmatprep.subr.mxu0 0.0
    %48 = vmatpush1.xpose.msra.mxu0 0.0
    %49 = vmatprep.subr.mxu0 0.0
    %50 = vmatpush1.xpose.msra.mxu0 0.0
    %51 = vmatprep.subr.mxu0 0.0
    %52 = vmatpush1.xpose.msra.mxu0 0.0
    %53 = vmatprep.subr.mxu0 0.0
    %54 = vmatpush1.xpose.msra.mxu0 0.0
    %55 = vmatprep.subr.mxu0 0.0
    %56 = vmatpush1.xpose.msra.mxu0 0.0
    %57 = vmatprep.subr.mxu0 0.0
    %58 = vmatpush1.xpose.msra.mxu0 0.0
    %59 = vmatprep.subr.mxu0 0.0
    %60 = vmatpush1.xpose.msra.mxu0 0.0
    %61 = vmatprep.subr.mxu0 0.0
    %62 = vmatpush1.xpose.msra.mxu0 0.0
    %63 = vmatprep.subr.mxu0 0.0
    %64 = vmatpush1.xpose.msra.mxu0 0.0
    %65 = vmatprep.subr.mxu0 0.0
    %66 = vmatpush1.xpose.msra.mxu0 0.0
    %67 = vmatprep.subr.mxu0 0.0
    %68 = vmatpush1.xpose.msra.mxu0 0.0
    %69 = vmatprep.subr.mxu0 0.0
    %70 = vmatpush1.xpose.msra.mxu0 0.0
    %71 = vmatprep.subr.mxu0 0.0
    %72 = vmatpush1.xpose.msra.mxu0 0.0
    %73 = vmatprep.subr.mxu0 0.0
    %74 = vmatpush1.xpose.msra.mxu0 0.0
    %75 = vmatprep.subr.mxu0 0.0
    %76 = vmatpush1.xpose.msra.mxu0 0.0
    %77 = vmatprep.subr.mxu0 0.0
    %78 = vmatpush1.xpose.msra.mxu0 0.0
    %79 = vmatprep.subr.mxu0 0.0
    %80 = vmatpush1.xpose.msra.mxu0 0.0
    %81 = vmatprep.subr.mxu0 0.0
    %82 = vmatpush1.xpose.msra.mxu0 0.0
    %83 = vmatprep.subr.mxu0 0.0
    %84 = vmatpush1.xpose.msra.mxu0 0.0
    %85 = vmatprep.subr.mxu0 0.0
    %86 = vmatpush1.xpose.msra.mxu0 0.0
    %87 = vmatprep.subr.mxu0 0.0
    %88 = vmatpush1.xpose.msra.mxu0 0.0
    %89 = vmatprep.subr.mxu0 0.0
    %90 = vmatpush1.xpose.msra.mxu0 0.0
    %91 = vmatprep.subr.mxu0 0.0
    %92 = vmatpush1.xpose.msra.mxu0 0.0
    %93 = vmatprep.subr.mxu0 0.0
    %94 = vmatpush1.xpose.msra.mxu0 0.0
    %95 = vmatprep.subr.mxu0 0.0
    %96 = vmatpush1.xpose.msra.mxu0 0.0
    %97 = vmatprep.mubr.f32.mxu0 0.0
    %98 = vmatmul.mubr.f32.gmra.mrb[0].mxu0 %v31
    %v99 = vpop.f32.mrb[0].mxu0
    %v100 = vadd.f32 0.0, %v99
    %v101 = vpop.f32.mrb[0].mxu0
    %102 = vdwg.mxu0
    %v103 = vmul.f32 %v100, 0.5
    %v104 = vadd.f32 %v103, 0.2
    %v105 = vmax.f32 %v104, 0.0
    %v106 = vlaneseq
    %v107 = vshrl.u32 %v106, 7
    %v108 = vlaneseq
    %v109 = vand.u32 %v108, 127
    %vm110 = vcmp.lt.s32.totalorder %v107, 8
    %vm111 = vcmp.lt.s32.totalorder %v109, 8
    %vm112 = vmand %vm110, %vm111
    %vm113 = vcmp.ne.s32.totalorder %v107, %v109
    %vm114 = vmand %vm112, %vm113
    %v115 = vmul.f32 %v105, %v105
    %v116 = vsel %vm114, %v115, 0.0
    %vm117 = vcmask 64512
    %v118 = vsel %vm117, %v116, 0.0
    %119 = vadd.xlane.f32.xlu0 %v118
    %v120 = vpop.xlane.xlu0 %119
    %v121 = vrot.slane %v120, 4
    %v122 = vadd.f32 %v120, %v121
    %v123 = vrot.slane %v122, 2
    %v124 = vadd.f32 %v122, %v123
    %v125 = vrot.slane %v124, 1
    %v126 = vadd.f32 %v124, %v125
    %s127 = vtos %v126
    %s128 = sadd.f32 %s127, 3.92
    %s129 = smul.f32 %s128, 0.015625
    %s130 = scalar_lea.smem [#allocation5], 0
    %131 = sst [smem:[%s130]] %s129
    // Predicated region
    $region10: #{tpu_custom_call.1} parent=1 // pred_check
      _
    $region11: #{tpu_custom_call.1} parent=1 // pred_check_branch
      %133 = sbr.rel (0) target = $region13
    $region12: #{tpu_custom_call.1} parent=1 // pred_region
      %s135 = ssub.s32 16, 16
      %136 = vsyncadd [#allocation4], %s135
      %139 = dma.smem_to_hbm [#allocation5], 16, %s1, [#allocation4]
    $region13: #{tpu_custom_call.1} parent=1 // pred_fallthru
      _
    // Predicated region
    $region14: #{tpu_custom_call.1} parent=1 // pred_check
      _
    $region15: #{tpu_custom_call.1} parent=1 // pred_check_branch
      %141 = sbr.rel (0) target = $region17
    $region16: #{tpu_custom_call.1} parent=1 // pred_region
      %142 = dma.done [#allocation4], 16
    $region17: #{tpu_custom_call.1} parent=1 // pred_fallthru
      _
    %143 = sfence
    %144 = vsyncpa [#allocation3], 1
    %145 = vsyncpa [#allocation4], 1

</llo_original>
